<compile_context>
chip_gen: v7x
topology: tpu7x:2x2x1
jax: 0.10.0
libtpu: 0.0.40
codegen_flags: <defaults>
</compile_context>

<pallas_src>
import functools

import jax
import jax.numpy as jnp
from jax.experimental import pallas as pl
from jax.experimental.pallas import tpu as pltpu


def _round_up(x: int, m: int) -> int:
    return ((x + m - 1) // m) * m


# --------------------------------------------------------------------------- #
# Kernel: fused policy+value MLP, one batch tile per grid step.
# --------------------------------------------------------------------------- #
def _fused_heads_kernel(x_ref, w1_ref, b1_ref,
                        pw2_ref, pb2_ref, vw2_ref, vb2_ref,
                        w3p_ref, w3v_ref, b3_ref,
                        out_ref, *, hp: int):
    # Layer 1: one dense GEMM over the concatenated input feeds both heads.
    h = jnp.dot(x_ref[...], w1_ref[...], preferred_element_type=jnp.float32)
    h = jnp.maximum(h + b1_ref[...], 0.0)

    # Split the heads at a 128-lane (vreg) boundary -> free slicing, no relayout.
    h_p = h[:, :hp].astype(pw2_ref.dtype)
    h_v = h[:, hp:].astype(vw2_ref.dtype)

    # Layer 2 per head: Hp-wide GEMMs, no zero-block MXU passes on any chip gen.
    h_p = jnp.maximum(
        jnp.dot(h_p, pw2_ref[...], preferred_element_type=jnp.float32) + pb2_ref[...],
        0.0)
    h_v = jnp.maximum(
        jnp.dot(h_v, vw2_ref[...], preferred_element_type=jnp.float32) + vb2_ref[...],
        0.0)

    # Layer 3 into the narrow output slab: cols [0:action_dim]=logits, col action_dim=value.
    out = (jnp.dot(h_p.astype(w3p_ref.dtype), w3p_ref[...],
                   preferred_element_type=jnp.float32)
           + jnp.dot(h_v.astype(w3v_ref.dtype), w3v_ref[...],
                     preferred_element_type=jnp.float32)
           + b3_ref[...])
    out_ref[...] = out.astype(out_ref.dtype)


# --------------------------------------------------------------------------- #
# Parameter packing (done once, outside the kernel). Weights are [in, out].
# --------------------------------------------------------------------------- #
def pack_params(params, state_dim, action_dim, hidden_dim,
                compute_dtype=jnp.bfloat16):
    H = hidden_dim
    Hp = _round_up(max(H, 128), 128)          # per-head hidden width, lane-dense
    H2p = 2 * Hp
    out_nw = _round_up(action_dim + 1, 8)     # narrow output slab width
    cd = jnp.dtype(compute_dtype)
    input_dim = params["pw1"].shape[0]

    # layer 1: both heads packed along the output (lane) axis
    w1 = jnp.zeros((input_dim, H2p), jnp.float32)
    w1 = w1.at[:, :H].set(params["pw1"])
    w1 = w1.at[:, Hp:Hp + H].set(params["vw1"])
    b1 = jnp.zeros((1, H2p), jnp.float32)
    b1 = b1.at[:, :H].set(params["pb1"])
    b1 = b1.at[:, Hp:Hp + H].set(params["vb1"])

    def pad_hh(w):   # [H, H] -> [Hp, Hp]
        return jnp.zeros((Hp, Hp), jnp.float32).at[:H, :H].set(w)

    def pad_hb(b):   # [1, H] -> [1, Hp]
        return jnp.zeros((1, Hp), jnp.float32).at[:, :H].set(b)

    pw2 = pad_hh(params["pw2"]); pb2 = pad_hb(params["pb2"])
    vw2 = pad_hh(params["vw2"]); vb2 = pad_hb(params["vb2"])

    # layer 3: logits in cols [0, action_dim), value in col action_dim
    w3p = jnp.zeros((Hp, out_nw), jnp.float32).at[:H, :action_dim].set(params["pw3"])
    w3v = jnp.zeros((Hp, out_nw), jnp.float32).at[:H, action_dim:action_dim + 1].set(
        params["vw3"])
    b3 = jnp.zeros((1, out_nw), jnp.float32)
    b3 = b3.at[:, :action_dim].set(params["pb3"])
    b3 = b3.at[:, action_dim:action_dim + 1].set(params["vb3"])

    return dict(
        w1=w1.astype(cd), b1=b1,
        pw2=pw2.astype(cd), pb2=pb2,
        vw2=vw2.astype(cd), vb2=vb2,
        w3p=w3p.astype(cd), w3v=w3v.astype(cd), b3=b3,
        action_dim=action_dim, hp=Hp, out_nw=out_nw, compute_dtype=cd,
    )


# --------------------------------------------------------------------------- #
# Wrapper
# --------------------------------------------------------------------------- #
def preference_conditioned_forward(states, preferences, packed, *,
                                   batch_tile=512):
    cd = packed["compute_dtype"]
    action_dim = packed["action_dim"]
    Hp = packed["hp"]
    out_nw = packed["out_nw"]

    B = states.shape[0]
    input_dim = states.shape[1] + preferences.shape[1]

    # Batch tile: multiple of 16 rows for bf16 (sublane packing), 8 for f32.
    align = 16 if jnp.dtype(cd) == jnp.dtype(jnp.bfloat16) else 8
    bt = _round_up(min(batch_tile, _round_up(B, align)), align)
    # Keep >=2 grid steps for medium/large batches: the parallel batch axis is
    # how work is sharded across v7x's two TensorCores (megacore).
    if B >= 256:
        bt = min(bt, _round_up((B + 1) // 2, align))
    B_pad = _round_up(B, bt)

    # Single fused prologue: concat + cast (+ tail pad).
    x = jnp.concatenate([states, preferences], axis=-1).astype(cd)
    if B_pad != B:
        x = jnp.pad(x, ((0, B_pad - B), (0, 0)))

    def resident(arr):  # whole-array VMEM-resident block
        return pl.BlockSpec(arr.shape, lambda i: (0, 0))

    in_specs = [
        pl.BlockSpec((bt, input_dim), lambda i: (i, 0)),
        resident(packed["w1"]), resident(packed["b1"]),
        resident(packed["pw2"]), resident(packed["pb2"]),
        resident(packed["vw2"]), resident(packed["vb2"]),
        resident(packed["w3p"]), resident(packed["w3v"]), resident(packed["b3"]),
    ]
    out_specs = pl.BlockSpec((bt, out_nw), lambda i: (i, 0))

    kernel = functools.partial(_fused_heads_kernel, hp=Hp)

    slab = pl.pallas_call(
        kernel,
        out_shape=jax.ShapeDtypeStruct((B_pad, out_nw), jnp.float32),
        grid=(B_pad // bt,),
        in_specs=in_specs,
        out_specs=out_specs,
        compiler_params=pltpu.CompilerParams(
            dimension_semantics=("parallel",),
        ),
    )(x,
      packed["w1"], packed["b1"],
      packed["pw2"], packed["pb2"],
      packed["vw2"], packed["vb2"],
      packed["w3p"], packed["w3v"], packed["b3"])

    logits = slab[:B, :action_dim]
    values = slab[:B, action_dim:action_dim + 1]
    return logits, values


# --------------------------------------------------------------------------- #
# Init (mimics PyTorch Linear default init), weights stored [in, out].
# --------------------------------------------------------------------------- #
def init_params(key, state_dim, action_dim, num_objectives, hidden_dim=128):
    input_dim = state_dim + num_objectives

    def linear(key, fan_in, fan_out):
        kw, kb = jax.random.split(key)
        bound = 1.0 / jnp.sqrt(fan_in)
        w = jax.random.uniform(kw, (fan_in, fan_out), jnp.float32, -bound, bound)
        b = jax.random.uniform(kb, (1, fan_out), jnp.float32, -bound, bound)
        return w, b

    keys = jax.random.split(key, 6)
    pw1, pb1 = linear(keys[0], input_dim, hidden_dim)
    pw2, pb2 = linear(keys[1], hidden_dim, hidden_dim)
    pw3, pb3 = linear(keys[2], hidden_dim, action_dim)
    vw1, vb1 = linear(keys[3], input_dim, hidden_dim)
    vw2, vb2 = linear(keys[4], hidden_dim, hidden_dim)
    vw3, vb3 = linear(keys[5], hidden_dim, 1)
    return dict(
        pw1=pw1, pb1=pb1, pw2=pw2, pb2=pb2, pw3=pw3, pb3=pb3,
        vw1=vw1, vb1=vb1, vw2=vw2, vb2=vb2, vw3=vw3, vb3=vb3,
    )


def _reference_forward(states, preferences, params):
    x = jnp.concatenate([states, preferences], axis=-1).astype(jnp.float32)
    h = jnp.maximum(x @ params["pw1"] + params["pb1"], 0.0)
    h = jnp.maximum(h @ params["pw2"] + params["pb2"], 0.0)
    logits = h @ params["pw3"] + params["pb3"]
    g = jnp.maximum(x @ params["vw1"] + params["vb1"], 0.0)
    g = jnp.maximum(g @ params["vw2"] + params["vb2"], 0.0)
    values = g @ params["vw3"] + params["vb3"]
    return logits, values


if __name__ == "__main__":
    batch_size = 8
    state_dim = 12
    num_objectives = 4
    action_dim = 6
    hidden_dim = 128  # module default; per-head hidden width is lane-dense (128)

    key = jax.random.PRNGKey(0)
    k_params, k_states, k_prefs = jax.random.split(key, 3)

    params = init_params(k_params, state_dim, action_dim, num_objectives, hidden_dim)
    states = jax.random.normal(k_states, (batch_size, state_dim), jnp.float32)
    prefs_raw = jax.random.uniform(k_prefs, (batch_size, num_objectives), jnp.float32)
    preferences = prefs_raw / jnp.sum(prefs_raw, axis=-1, keepdims=True)

    ref_logits, ref_values = _reference_forward(states, preferences, params)

    # ---- f32 compute path: matches the pure-JAX reference ----
    packed_f32 = pack_params(params, state_dim, action_dim, hidden_dim, jnp.float32)
    logits, values = preference_conditioned_forward(states, preferences, packed_f32)
    logits = jax.block_until_ready(logits)
    values = jax.block_until_ready(values)
    assert logits.shape == (batch_size, action_dim)
    assert values.shape == (batch_size, 1)
    assert jnp.allclose(logits, ref_logits, atol=1e-5, rtol=1e-5)
    assert jnp.allclose(values, ref_values, atol=1e-5, rtol=1e-5)

    # ---- ragged batch exercises the batch-padding path ----
    l5, v5 = preference_conditioned_forward(states[:5], preferences[:5], packed_f32)
    assert jnp.allclose(jax.block_until_ready(l5), ref_logits[:5], atol=1e-5, rtol=1e-5)
    assert jnp.allclose(jax.block_until_ready(v5), ref_values[:5], atol=1e-5, rtol=1e-5)

    # ---- default bf16 compute path (native MXU rate; f32 accumulation) ----
    packed_bf16 = pack_params(params, state_dim, action_dim, hidden_dim)  # bf16 default
    l16, v16 = preference_conditioned_forward(states, preferences, packed_bf16)
    l16 = jax.block_until_ready(l16)
    v16 = jax.block_until_ready(v16)
    assert l16.shape == (batch_size, action_dim) and v16.shape == (batch_size, 1)
    assert bool(jnp.all(jnp.isfinite(l16))) and bool(jnp.all(jnp.isfinite(v16)))
    assert jnp.allclose(l16, ref_logits, atol=8e-2, rtol=8e-2)
    assert jnp.allclose(v16, ref_values, atol=8e-2, rtol=8e-2)

    # ---- medium batch: >= 2 grid steps (v7x 2nd TensorCore) + tail padding ----
    kb = jax.random.PRNGKey(1)
    ks, kp = jax.random.split(kb)
    B_med = 300
    states_m = jax.random.normal(ks, (B_med, state_dim), jnp.float32)
    prefs_m = jax.random.uniform(kp, (B_med, num_objectives), jnp.float32)
    prefs_m = prefs_m / jnp.sum(prefs_m, axis=-1, keepdims=True)
    lm, vm = preference_conditioned_forward(states_m, prefs_m, packed_f32)
    rlm, rvm = _reference_forward(states_m, prefs_m, params)
    assert jnp.allclose(jax.block_until_ready(lm), rlm, atol=1e-5, rtol=1e-5)
    assert jnp.allclose(jax.block_until_ready(vm), rvm, atol=1e-5, rtol=1e-5)

    print("KERNEL_OK")
</pallas_src>

<mosaic_0001>
module attributes {stable_mosaic.version = 11 : i64} {
  func.func @_fused_heads_kernel(%arg0: i32, %arg1: memref<8x16xf32, #tpu.memory_space<vmem>>, %arg2: memref<16x256xf32, #tpu.memory_space<vmem>>, %arg3: memref<1x256xf32, #tpu.memory_space<vmem>>, %arg4: memref<128x128xf32, #tpu.memory_space<vmem>>, %arg5: memref<1x128xf32, #tpu.memory_space<vmem>>, %arg6: memref<128x128xf32, #tpu.memory_space<vmem>>, %arg7: memref<1x128xf32, #tpu.memory_space<vmem>>, %arg8: memref<128x8xf32, #tpu.memory_space<vmem>>, %arg9: memref<128x8xf32, #tpu.memory_space<vmem>>, %arg10: memref<1x8xf32, #tpu.memory_space<vmem>>, %arg11: memref<8x8xf32, #tpu.memory_space<vmem>>) attributes {dimension_semantics = [#tpu.dimension_semantics<parallel>], iteration_bounds = array<i64: 1>, scalar_prefetch = 0 : i64, scratch_operands = 0 : i64, tpu.core_type = #tpu.core_type<tc>, window_params = [{transform_indices = @transform_0, window_bounds = array<i64: 8, 16>}, {pipeline_mode = #tpu.pipeline_mode<synchronous>, transform_indices = @transform_1, window_bounds = array<i64: 16, 256>}, {pipeline_mode = #tpu.pipeline_mode<synchronous>, transform_indices = @transform_2, window_bounds = array<i64: 1, 256>}, {pipeline_mode = #tpu.pipeline_mode<synchronous>, transform_indices = @transform_3, window_bounds = array<i64: 128, 128>}, {pipeline_mode = #tpu.pipeline_mode<synchronous>, transform_indices = @transform_4, window_bounds = array<i64: 1, 128>}, {pipeline_mode = #tpu.pipeline_mode<synchronous>, transform_indices = @transform_5, window_bounds = array<i64: 128, 128>}, {pipeline_mode = #tpu.pipeline_mode<synchronous>, transform_indices = @transform_6, window_bounds = array<i64: 1, 128>}, {pipeline_mode = #tpu.pipeline_mode<synchronous>, transform_indices = @transform_7, window_bounds = array<i64: 128, 8>}, {pipeline_mode = #tpu.pipeline_mode<synchronous>, transform_indices = @transform_8, window_bounds = array<i64: 128, 8>}, {pipeline_mode = #tpu.pipeline_mode<synchronous>, transform_indices = @transform_9, window_bounds = array<i64: 1, 8>}, {transform_indices = @transform_10, window_bounds = array<i64: 8, 8>}]} {
    %c0 = arith.constant 0 : index
    %c0_0 = arith.constant 0 : index
    %0 = vector.load %arg1[%c0, %c0_0] : memref<8x16xf32, #tpu.memory_space<vmem>>, vector<8x16xf32>
    %c0_1 = arith.constant 0 : index
    %c0_2 = arith.constant 0 : index
    %1 = vector.load %arg2[%c0_1, %c0_2] : memref<16x256xf32, #tpu.memory_space<vmem>>, vector<16x256xf32>
    %cst = arith.constant dense<0.000000e+00> : vector<8x256xf32>
    %2 = tpu.matmul %0, %1, %cst {dimension_numbers = #tpu.dot_dimension_numbers<[1], [0], [0], [1], [0, 0, 1, 1], [], []>} : vector<8x16xf32>, vector<16x256xf32>, vector<8x256xf32> -> vector<8x256xf32>
    %c0_3 = arith.constant 0 : index
    %c0_4 = arith.constant 0 : index
    %3 = vector.load %arg3[%c0_3, %c0_4] : memref<1x256xf32, #tpu.memory_space<vmem>>, vector<1x256xf32>
    %4 = vector.broadcast %3 : vector<1x256xf32> to vector<8x256xf32>
    %5 = arith.addf %2, %4 : vector<8x256xf32>
    %cst_5 = arith.constant 0.000000e+00 : f32
    %6 = vector.broadcast %cst_5 : f32 to vector<8x256xf32>
    %7 = arith.maximumf %5, %6 : vector<8x256xf32>
    %8 = vector.extract_strided_slice %7 {offsets = [0, 0], sizes = [8, 128], strides = [1, 1]} : vector<8x256xf32> to vector<8x128xf32>
    %9 = vector.extract_strided_slice %7 {offsets = [0, 128], sizes = [8, 128], strides = [1, 1]} : vector<8x256xf32> to vector<8x128xf32>
    %c0_6 = arith.constant 0 : index
    %c0_7 = arith.constant 0 : index
    %10 = vector.load %arg4[%c0_6, %c0_7] : memref<128x128xf32, #tpu.memory_space<vmem>>, vector<128x128xf32>
    %cst_8 = arith.constant dense<0.000000e+00> : vector<8x128xf32>
    %11 = tpu.matmul %8, %10, %cst_8 {dimension_numbers = #tpu.dot_dimension_numbers<[1], [0], [0], [1], [0, 0, 1, 1], [], []>} : vector<8x128xf32>, vector<128x128xf32>, vector<8x128xf32> -> vector<8x128xf32>
    %c0_9 = arith.constant 0 : index
    %c0_10 = arith.constant 0 : index
    %12 = vector.load %arg5[%c0_9, %c0_10] : memref<1x128xf32, #tpu.memory_space<vmem>>, vector<1x128xf32>
    %13 = vector.broadcast %12 : vector<1x128xf32> to vector<8x128xf32>
    %14 = arith.addf %11, %13 : vector<8x128xf32>
    %cst_11 = arith.constant 0.000000e+00 : f32
    %15 = vector.broadcast %cst_11 : f32 to vector<8x128xf32>
    %16 = arith.maximumf %14, %15 : vector<8x128xf32>
    %c0_12 = arith.constant 0 : index
    %c0_13 = arith.constant 0 : index
    %17 = vector.load %arg6[%c0_12, %c0_13] : memref<128x128xf32, #tpu.memory_space<vmem>>, vector<128x128xf32>
    %cst_14 = arith.constant dense<0.000000e+00> : vector<8x128xf32>
    %18 = tpu.matmul %9, %17, %cst_14 {dimension_numbers = #tpu.dot_dimension_numbers<[1], [0], [0], [1], [0, 0, 1, 1], [], []>} : vector<8x128xf32>, vector<128x128xf32>, vector<8x128xf32> -> vector<8x128xf32>
    %c0_15 = arith.constant 0 : index
    %c0_16 = arith.constant 0 : index
    %19 = vector.load %arg7[%c0_15, %c0_16] : memref<1x128xf32, #tpu.memory_space<vmem>>, vector<1x128xf32>
    %20 = vector.broadcast %19 : vector<1x128xf32> to vector<8x128xf32>
    %21 = arith.addf %18, %20 : vector<8x128xf32>
    %cst_17 = arith.constant 0.000000e+00 : f32
    %22 = vector.broadcast %cst_17 : f32 to vector<8x128xf32>
    %23 = arith.maximumf %21, %22 : vector<8x128xf32>
    %c0_18 = arith.constant 0 : index
    %c0_19 = arith.constant 0 : index
    %24 = vector.load %arg8[%c0_18, %c0_19] : memref<128x8xf32, #tpu.memory_space<vmem>>, vector<128x8xf32>
    %cst_20 = arith.constant dense<0.000000e+00> : vector<8x8xf32>
    %25 = tpu.matmul %16, %24, %cst_20 {dimension_numbers = #tpu.dot_dimension_numbers<[1], [0], [0], [1], [0, 0, 1, 1], [], []>} : vector<8x128xf32>, vector<128x8xf32>, vector<8x8xf32> -> vector<8x8xf32>
    %c0_21 = arith.constant 0 : index
    %c0_22 = arith.constant 0 : index
    %26 = vector.load %arg9[%c0_21, %c0_22] : memref<128x8xf32, #tpu.memory_space<vmem>>, vector<128x8xf32>
    %cst_23 = arith.constant dense<0.000000e+00> : vector<8x8xf32>
    %27 = tpu.matmul %23, %26, %cst_23 {dimension_numbers = #tpu.dot_dimension_numbers<[1], [0], [0], [1], [0, 0, 1, 1], [], []>} : vector<8x128xf32>, vector<128x8xf32>, vector<8x8xf32> -> vector<8x8xf32>
    %28 = arith.addf %25, %27 : vector<8x8xf32>
    %c0_24 = arith.constant 0 : index
    %c0_25 = arith.constant 0 : index
    %29 = vector.load %arg10[%c0_24, %c0_25] : memref<1x8xf32, #tpu.memory_space<vmem>>, vector<1x8xf32>
    %30 = vector.broadcast %29 : vector<1x8xf32> to vector<8x8xf32>
    %31 = arith.addf %28, %30 : vector<8x8xf32>
    %c0_26 = arith.constant 0 : index
    %c0_27 = arith.constant 0 : index
    %32 = vector.load %arg11[%c0_26, %c0_27] : memref<8x8xf32, #tpu.memory_space<vmem>>, vector<8x8xf32>
    tpu.vector_store %arg11[%c0_26, %c0_27], %31 {strides = array<i32>} : memref<8x8xf32, #tpu.memory_space<vmem>>, vector<8x8xf32>,
    return
  }
  func.func @transform_0(%arg0: i32) -> (i32, i32) {
    %c0_i32 = arith.constant 0 : i32
    %c0_i32_0 = arith.constant 0 : i32
    return %arg0, %c0_i32 : i32, i32
  }
  func.func @transform_1(%arg0: i32) -> (i32, i32) {
    %c0_i32 = arith.constant 0 : i32
    %c0_i32_0 = arith.constant 0 : i32
    %c0_i32_1 = arith.constant 0 : i32
    return %c0_i32, %c0_i32_0 : i32, i32
  }
  func.func @transform_2(%arg0: i32) -> (i32, i32) {
    %c0_i32 = arith.constant 0 : i32
    %c0_i32_0 = arith.constant 0 : i32
    %c0_i32_1 = arith.constant 0 : i32
    return %c0_i32, %c0_i32_0 : i32, i32
  }
  func.func @transform_3(%arg0: i32) -> (i32, i32) {
    %c0_i32 = arith.constant 0 : i32
    %c0_i32_0 = arith.constant 0 : i32
    %c0_i32_1 = arith.constant 0 : i32
    return %c0_i32, %c0_i32_0 : i32, i32
  }
  func.func @transform_4(%arg0: i32) -> (i32, i32) {
    %c0_i32 = arith.constant 0 : i32
    %c0_i32_0 = arith.constant 0 : i32
    %c0_i32_1 = arith.constant 0 : i32
    return %c0_i32, %c0_i32_0 : i32, i32
  }
  func.func @transform_5(%arg0: i32) -> (i32, i32) {
    %c0_i32 = arith.constant 0 : i32
    %c0_i32_0 = arith.constant 0 : i32
    %c0_i32_1 = arith.constant 0 : i32
    return %c0_i32, %c0_i32_0 : i32, i32
  }
  func.func @transform_6(%arg0: i32) -> (i32, i32) {
    %c0_i32 = arith.constant 0 : i32
    %c0_i32_0 = arith.constant 0 : i32
    %c0_i32_1 = arith.constant 0 : i32
    return %c0_i32, %c0_i32_0 : i32, i32
  }
  func.func @transform_7(%arg0: i32) -> (i32, i32) {
    %c0_i32 = arith.constant 0 : i32
    %c0_i32_0 = arith.constant 0 : i32
    %c0_i32_1 = arith.constant 0 : i32
    return %c0_i32, %c0_i32_0 : i32, i32
  }
  func.func @transform_8(%arg0: i32) -> (i32, i32) {
    %c0_i32 = arith.constant 0 : i32
    %c0_i32_0 = arith.constant 0 : i32
    %c0_i32_1 = arith.constant 0 : i32
    return %c0_i32, %c0_i32_0 : i32, i32
  }
  func.func @transform_9(%arg0: i32) -> (i32, i32) {
    %c0_i32 = arith.constant 0 : i32
    %c0_i32_0 = arith.constant 0 : i32
    %c0_i32_1 = arith.constant 0 : i32
    return %c0_i32, %c0_i32_0 : i32, i32
  }
  func.func @transform_10(%arg0: i32) -> (i32, i32) {
    %c0_i32 = arith.constant 0 : i32
    %c0_i32_0 = arith.constant 0 : i32
    return %arg0, %c0_i32 : i32, i32
  }
}

</mosaic_0001>

<llo_original>
// kernel: tpu_custom_call.1
$region0: #{tpu_custom_call.1}
  #allocation0 [shape = 'u32[]', space=smem, size = 0x4, offset = 0x4, fixed_abs, tag = 'smem constant byte address 0x4 - core index']
  #allocation1 [shape = 'u32[144,128]{1,0:T(1,128)}', space=vmem, size = 0x12000, scoped, tag = 'internal scratch']
  %s0 = inlined_call_operand.vmem [shape: f32[8,16], index: 0, kind: input, shape index: {}]
  %s1 = inlined_call_operand.hbm [shape: f32[16,256], index: 1, kind: input, shape index: {}]
  %s2 = inlined_call_operand.vmem [shape: f32[1,256], index: 2, kind: input, shape index: {}]
  %s3 = inlined_call_operand.vmem [shape: f32[128,128], index: 3, kind: input, shape index: {}]
  %s4 = inlined_call_operand.vmem [shape: f32[1,128], index: 4, kind: input, shape index: {}]
  %s5 = inlined_call_operand.vmem [shape: f32[128,128], index: 5, kind: input, shape index: {}]
  %s6 = inlined_call_operand.vmem [shape: f32[1,128], index: 6, kind: input, shape index: {}]
  %s7 = inlined_call_operand.vmem [shape: f32[128,8], index: 7, kind: input, shape index: {}]
  %s8 = inlined_call_operand.vmem [shape: f32[128,8], index: 8, kind: input, shape index: {}]
  %s9 = inlined_call_operand.vmem [shape: f32[1,8], index: 9, kind: input, shape index: {}]
  %s10 = inlined_call_operand.hbm [shape: f32[8,8], index: 10, kind: output, shape index: {}]
  %s11 = sld [smem:[#allocation0]]
  $region54: #{tpu_custom_call.1} parent=0
    _
  %s13 = ssub.s32 1, %s11
  %s14 = scalar_select 0, %s13, %s11
  $region1: #{tpu_custom_call.1} parent=0
    #allocation2 [shape = 'u8[16384]{0}', space=vmem, size = 0x4000, scoped, tag = 'input window, operand 1, single buffered']
    #allocation3 [shape = 's32[1]{0}', space=sflag, size = 0x4, scoped, tag = 'scoped memory for tpu_custom_call.1']
    #allocation4 [shape = 's32[1]{0}', space=sflag, size = 0x4, scoped, tag = 'scoped memory for tpu_custom_call.1']
    #allocation5 [shape = 'u8[4096]{0}', space=vmem, size = 0x1000, scoped, tag = 'output window, operand 0, single buffered']
    %15 = vsyncpa [#allocation3], 0
    %16 = vsyncpa [#allocation4], 0
    // Predicated region
    $region2: #{tpu_custom_call.1} parent=1 // pred_check
      _
    $region3: #{tpu_custom_call.1} parent=1 // pred_check_branch
      %18 = sbr.rel (0) target = $region5
    $region4: #{tpu_custom_call.1} parent=1 // pred_region
      _
    $region5: #{tpu_custom_call.1} parent=1 // pred_fallthru
      _
    // Predicated region
    $region6: #{tpu_custom_call.1} parent=1 // pred_check
      _
    $region7: #{tpu_custom_call.1} parent=1 // pred_check_branch
      %20 = sbr.rel (0) target = $region9
    $region8: #{tpu_custom_call.1} parent=1 // pred_region
      %s22 = ssub.s32 512, 512
      %23 = vsyncadd [#allocation3], %s22
      %s24 = sshll.u32 [#allocation2], 4
      %s25 = int_to_ptr.vmem [resolvable:$true] %s24
      %30 = dma.hbm_to_vmem [thread:$0]  %s1, 512, %s25, [#allocation3], 256, 256, 16
    $region9: #{tpu_custom_call.1} parent=1 // pred_fallthru
      _
    // Predicated region
    $region10: #{tpu_custom_call.1} parent=1 // pred_check
      _
    $region11: #{tpu_custom_call.1} parent=1 // pred_check_branch
      %32 = sbr.rel (0) target = $region13
    $region12: #{tpu_custom_call.1} parent=1 // pred_region
      _
    $region13: #{tpu_custom_call.1} parent=1 // pred_fallthru
      _
    // Predicated region
    $region14: #{tpu_custom_call.1} parent=1 // pred_check
      _
    $region15: #{tpu_custom_call.1} parent=1 // pred_check_branch
      %34 = sbr.rel (0) target = $region17
    $region16: #{tpu_custom_call.1} parent=1 // pred_region
      _
    $region17: #{tpu_custom_call.1} parent=1 // pred_fallthru
      _
    // Predicated region
    $region18: #{tpu_custom_call.1} parent=1 // pred_check
      _
    $region19: #{tpu_custom_call.1} parent=1 // pred_check_branch
      %36 = sbr.rel (0) target = $region21
    $region20: #{tpu_custom_call.1} parent=1 // pred_region
      _
    $region21: #{tpu_custom_call.1} parent=1 // pred_fallthru
      _
    // Predicated region
    $region22: #{tpu_custom_call.1} parent=1 // pred_check
      _
    $region23: #{tpu_custom_call.1} parent=1 // pred_check_branch
      %38 = sbr.rel (0) target = $region25
    $region24: #{tpu_custom_call.1} parent=1 // pred_region
      _
    $region25: #{tpu_custom_call.1} parent=1 // pred_fallthru
      _
    // Predicated region
    $region26: #{tpu_custom_call.1} parent=1 // pred_check
      _
    $region27: #{tpu_custom_call.1} parent=1 // pred_check_branch
      %40 = sbr.rel (0) target = $region29
    $region28: #{tpu_custom_call.1} parent=1 // pred_region
      _
    $region29: #{tpu_custom_call.1} parent=1 // pred_fallthru
      _
    // Predicated region
    $region30: #{tpu_custom_call.1} parent=1 // pred_check
      _
    $region31: #{tpu_custom_call.1} parent=1 // pred_check_branch
      %42 = sbr.rel (0) target = $region33
    $region32: #{tpu_custom_call.1} parent=1 // pred_region
      _
    $region33: #{tpu_custom_call.1} parent=1 // pred_fallthru
      _
    // Predicated region
    $region34: #{tpu_custom_call.1} parent=1 // pred_check
      _
    $region35: #{tpu_custom_call.1} parent=1 // pred_check_branch
      %44 = sbr.rel (0) target = $region37
    $region36: #{tpu_custom_call.1} parent=1 // pred_region
      _
    $region37: #{tpu_custom_call.1} parent=1 // pred_fallthru
      _
    // Predicated region
    $region38: #{tpu_custom_call.1} parent=1 // pred_check
      _
    $region39: #{tpu_custom_call.1} parent=1 // pred_check_branch
      %46 = sbr.rel (0) target = $region41
    $region40: #{tpu_custom_call.1} parent=1 // pred_region
      _
    $region41: #{tpu_custom_call.1} parent=1 // pred_fallthru
      _
    // Predicated region
    $region42: #{tpu_custom_call.1} parent=1 // pred_check
      _
    $region43: #{tpu_custom_call.1} parent=1 // pred_check_branch
      %48 = sbr.rel (0) target = $region45
    $region44: #{tpu_custom_call.1} parent=1 // pred_region
      %49 = dma.done [#allocation3], 512
    $region45: #{tpu_custom_call.1} parent=1 // pred_fallthru
      _
    %v50 = vld [vmem:[%s0] sm:$0xff]
    %v51 = vld [vmem:[#allocation2] sm:$0xff]
    %v52 = vld [vmem:[#allocation2 + $0x8] sm:$0xff]
    %v53 = vld [vmem:[#allocation2 + $0x10] sm:$0xff]
    %v54 = vld [vmem:[#allocation2 + $0x18] sm:$0xff]
    %v55 = vld [vmem:[%s2] sm:$0x3]
    %v57 = vlaneseq
    %v58 = vshrl.u32 %v57, 7
    %v59 = vsub.s32 0, %v58
    %v60 = vrot.slane %v55, %v59
    %v61 = vlaneseq
    %v62 = vshrl.u32 %v61, 7
    %v63 = vsub.s32 1, %v62
    %v64 = vrot.slane %v55, %v63
    %vm67 = vcmask 130048
    %v69 = vsel %vm67, %v50, 0
    %71 = vmatprep.subr.mxu0 %v52
    %72 = vmatpush1.msra.mxu0 %v51
    %73 = vmatprep.subr.mxu0 %v54
    %74 = vmatpush1.msra.mxu0 %v53
    %75 = vmatprep.subr.mxu0 0.0
    %76 = vmatpush1.msra.mxu0 0.0
    %77 = vmatprep.subr.mxu0 0.0
    %78 = vmatpush1.msra.mxu0 0.0
    %79 = vmatprep.subr.mxu0 0.0
    %80 = vmatpush1.msra.mxu0 0.0
    %81 = vmatprep.subr.mxu0 0.0
    %82 = vmatpush1.msra.mxu0 0.0
    %83 = vmatprep.subr.mxu0 0.0
    %84 = vmatpush1.msra.mxu0 0.0
    %85 = vmatprep.subr.mxu0 0.0
    %86 = vmatpush1.msra.mxu0 0.0
    %87 = vmatprep.subr.mxu0 0.0
    %88 = vmatpush1.msra.mxu0 0.0
    %89 = vmatprep.subr.mxu0 0.0
    %90 = vmatpush1.msra.mxu0 0.0
    %91 = vmatprep.subr.mxu0 0.0
    %92 = vmatpush1.msra.mxu0 0.0
    %93 = vmatprep.subr.mxu0 0.0
    %94 = vmatpush1.msra.mxu0 0.0
    %95 = vmatprep.subr.mxu0 0.0
    %96 = vmatpush1.msra.mxu0 0.0
    %97 = vmatprep.subr.mxu0 0.0
    %98 = vmatpush1.msra.mxu0 0.0
    %99 = vmatprep.subr.mxu0 0.0
    %100 = vmatpush1.msra.mxu0 0.0
    %101 = vmatprep.subr.mxu0 0.0
    %102 = vmatpush1.msra.mxu0 0.0
    %103 = vmatprep.subr.mxu0 0.0
    %104 = vmatpush1.msra.mxu0 0.0
    %105 = vmatprep.subr.mxu0 0.0
    %106 = vmatpush1.msra.mxu0 0.0
    %107 = vmatprep.subr.mxu0 0.0
    %108 = vmatpush1.msra.mxu0 0.0
    %109 = vmatprep.subr.mxu0 0.0
    %110 = vmatpush1.msra.mxu0 0.0
    %111 = vmatprep.subr.mxu0 0.0
    %112 = vmatpush1.msra.mxu0 0.0
    %113 = vmatprep.subr.mxu0 0.0
    %114 = vmatpush1.msra.mxu0 0.0
    %115 = vmatprep.subr.mxu0 0.0
    %116 = vmatpush1.msra.mxu0 0.0
    %117 = vmatprep.subr.mxu0 0.0
    %118 = vmatpush1.msra.mxu0 0.0
    %119 = vmatprep.subr.mxu0 0.0
    %120 = vmatpush1.msra.mxu0 0.0
    %121 = vmatprep.subr.mxu0 0.0
    %122 = vmatpush1.msra.mxu0 0.0
    %123 = vmatprep.subr.mxu0 0.0
    %124 = vmatpush1.msra.mxu0 0.0
    %125 = vmatprep.subr.mxu0 0.0
    %126 = vmatpush1.msra.mxu0 0.0
    %127 = vmatprep.subr.mxu0 0.0
    %128 = vmatpush1.msra.mxu0 0.0
    %129 = vmatprep.subr.mxu0 0.0
    %130 = vmatpush1.msra.mxu0 0.0
    %131 = vmatprep.subr.mxu0 0.0
    %132 = vmatpush1.msra.mxu0 0.0
    %133 = vmatprep.subr.mxu0 0.0
    %134 = vmatpush1.msra.mxu0 0.0
    %135 = vmatprep.mubr.f32.mxu0 0.0
    %136 = vmatmul.mubr.f32.gmra.mrb[0].mxu0 %v69
    %v137 = vpop.f32.mrb[0].mxu0
    %v138 = vadd.f32 %v60, %v137
    %v139 = vpop.f32.mrb[0].mxu0
    %v140 = vadd.f32 %v64, %v139
    %141 = vdwg.mxu0
    %v142 = vmax.f32 %v138, 0.0
    %v143 = vmax.f32 %v140, 0.0
    %v144 = vld [vmem:[%s3] sm:$0xff]
    %v145 = vld [vmem:[%s3 + $0x8] sm:$0xff]
    %v146 = vld [vmem:[%s3 + $0x10] sm:$0xff]
    %v147 = vld [vmem:[%s3 + $0x18] sm:$0xff]
    %v148 = vld [vmem:[%s3 + $0x20] sm:$0xff]
    %v149 = vld [vmem:[%s3 + $0x28] sm:$0xff]
    %v150 = vld [vmem:[%s3 + $0x30] sm:$0xff]
    %v151 = vld [vmem:[%s3 + $0x38] sm:$0xff]
    %v152 = vld [vmem:[%s3 + $0x40] sm:$0xff]
    %v153 = vld [vmem:[%s3 + $0x48] sm:$0xff]
    %v154 = vld [vmem:[%s3 + $0x50] sm:$0xff]
    %v155 = vld [vmem:[%s3 + $0x58] sm:$0xff]
    %v156 = vld [vmem:[%s3 + $0x60] sm:$0xff]
    %v157 = vld [vmem:[%s3 + $0x68] sm:$0xff]
    %v158 = vld [vmem:[%s3 + $0x70] sm:$0xff]
    %v159 = vld [vmem:[%s3 + $0x78] sm:$0xff]
    %v160 = vld [vmem:[%s4] sm:$0x1]
    %v162 = vlaneseq
    %v163 = vshrl.u32 %v162, 7
    %v164 = vsub.s32 0, %v163
    %v165 = vrot.slane %v160, %v164
    %167 = vmatprep.subr.mxu0 0.0
    %168 = vmatpush1.msra.mxu0 %v144
    %169 = vmatprep.subr.mxu0 0.0
    %170 = vmatpush1.msra.mxu0 %v145
    %171 = vmatprep.subr.mxu0 0.0
    %172 = vmatpush1.msra.mxu0 %v146
    %173 = vmatprep.subr.mxu0 0.0
    %174 = vmatpush1.msra.mxu0 %v147
    %175 = vmatprep.subr.mxu0 0.0
    %176 = vmatpush1.msra.mxu0 %v148
    %177 = vmatprep.subr.mxu0 0.0
    %178 = vmatpush1.msra.mxu0 %v149
    %179 = vmatprep.subr.mxu0 0.0
    %180 = vmatpush1.msra.mxu0 %v150
    %181 = vmatprep.subr.mxu0 0.0
    %182 = vmatpush1.msra.mxu0 %v151
    %183 = vmatprep.subr.mxu0 0.0
    %184 = vmatpush1.msra.mxu0 %v152
    %185 = vmatprep.subr.mxu0 0.0
    %186 = vmatpush1.msra.mxu0 %v153
    %187 = vmatprep.subr.mxu0 0.0
    %188 = vmatpush1.msra.mxu0 %v154
    %189 = vmatprep.subr.mxu0 0.0
    %190 = vmatpush1.msra.mxu0 %v155
    %191 = vmatprep.subr.mxu0 0.0
    %192 = vmatpush1.msra.mxu0 %v156
    %193 = vmatprep.subr.mxu0 0.0
    %194 = vmatpush1.msra.mxu0 %v157
    %195 = vmatprep.subr.mxu0 0.0
    %196 = vmatpush1.msra.mxu0 %v158
    %197 = vmatprep.subr.mxu0 0.0
    %198 = vmatpush1.msra.mxu0 %v159
    %199 = vmatprep.subr.mxu0 0.0
    %200 = vmatpush1.msra.mxu0 0.0
    %201 = vmatprep.subr.mxu0 0.0
    %202 = vmatpush1.msra.mxu0 0.0
    %203 = vmatprep.subr.mxu0 0.0
    %204 = vmatpush1.msra.mxu0 0.0
    %205 = vmatprep.subr.mxu0 0.0
    %206 = vmatpush1.msra.mxu0 0.0
    %207 = vmatprep.subr.mxu0 0.0
    %208 = vmatpush1.msra.mxu0 0.0
    %209 = vmatprep.subr.mxu0 0.0
    %210 = vmatpush1.msra.mxu0 0.0
    %211 = vmatprep.subr.mxu0 0.0
    %212 = vmatpush1.msra.mxu0 0.0
    %213 = vmatprep.subr.mxu0 0.0
    %214 = vmatpush1.msra.mxu0 0.0
    %215 = vmatprep.subr.mxu0 0.0
    %216 = vmatpush1.msra.mxu0 0.0
    %217 = vmatprep.subr.mxu0 0.0
    %218 = vmatpush1.msra.mxu0 0.0
    %219 = vmatprep.subr.mxu0 0.0
    %220 = vmatpush1.msra.mxu0 0.0
    %221 = vmatprep.subr.mxu0 0.0
    %222 = vmatpush1.msra.mxu0 0.0
    %223 = vmatprep.subr.mxu0 0.0
    %224 = vmatpush1.msra.mxu0 0.0
    %225 = vmatprep.subr.mxu0 0.0
    %226 = vmatpush1.msra.mxu0 0.0
    %227 = vmatprep.subr.mxu0 0.0
    %228 = vmatpush1.msra.mxu0 0.0
    %229 = vmatprep.subr.mxu0 0.0
    %230 = vmatpush1.msra.mxu0 0.0
    %231 = vmatprep.mubr.f32.mxu0 0.0
    %232 = vmatmul.mubr.f32.gmra.mrb[0].mxu0 %v142
    %v233 = vpop.f32.mrb[0].mxu0
    %v234 = vadd.f32 %v165, %v233
    %v235 = vpop.f32.mrb[0].mxu0
    %236 = vdwg.mxu0
    %v237 = vmax.f32 %v234, 0.0
    %v238 = vld [vmem:[%s5] sm:$0xff]
    %v239 = vld [vmem:[%s5 + $0x8] sm:$0xff]
    %v240 = vld [vmem:[%s5 + $0x10] sm:$0xff]
    %v241 = vld [vmem:[%s5 + $0x18] sm:$0xff]
    %v242 = vld [vmem:[%s5 + $0x20] sm:$0xff]
    %v243 = vld [vmem:[%s5 + $0x28] sm:$0xff]
    %v244 = vld [vmem:[%s5 + $0x30] sm:$0xff]
    %v245 = vld [vmem:[%s5 + $0x38] sm:$0xff]
    %v246 = vld [vmem:[%s5 + $0x40] sm:$0xff]
    %v247 = vld [vmem:[%s5 + $0x48] sm:$0xff]
    %v248 = vld [vmem:[%s5 + $0x50] sm:$0xff]
    %v249 = vld [vmem:[%s5 + $0x58] sm:$0xff]
    %v250 = vld [vmem:[%s5 + $0x60] sm:$0xff]
    %v251 = vld [vmem:[%s5 + $0x68] sm:$0xff]
    %v252 = vld [vmem:[%s5 + $0x70] sm:$0xff]
    %v253 = vld [vmem:[%s5 + $0x78] sm:$0xff]
    %v254 = vld [vmem:[%s6] sm:$0x1]
    %v256 = vlaneseq
    %v257 = vshrl.u32 %v256, 7
    %v258 = vsub.s32 0, %v257
    %v259 = vrot.slane %v254, %v258
    %261 = vmatprep.subr.mxu0 0.0
    %262 = vmatpush1.msra.mxu0 %v238
    %263 = vmatprep.subr.mxu0 0.0
    %264 = vmatpush1.msra.mxu0 %v239
    %265 = vmatprep.subr.mxu0 0.0
    %266 = vmatpush1.msra.mxu0 %v240
    %267 = vmatprep.subr.mxu0 0.0
    %268 = vmatpush1.msra.mxu0 %v241
    %269 = vmatprep.subr.mxu0 0.0
    %270 = vmatpush1.msra.mxu0 %v242
    %271 = vmatprep.subr.mxu0 0.0
    %272 = vmatpush1.msra.mxu0 %v243
    %273 = vmatprep.subr.mxu0 0.0
    %274 = vmatpush1.msra.mxu0 %v244
    %275 = vmatprep.subr.mxu0 0.0
    %276 = vmatpush1.msra.mxu0 %v245
    %277 = vmatprep.subr.mxu0 0.0
    %278 = vmatpush1.msra.mxu0 %v246
    %279 = vmatprep.subr.mxu0 0.0
    %280 = vmatpush1.msra.mxu0 %v247
    %281 = vmatprep.subr.mxu0 0.0
    %282 = vmatpush1.msra.mxu0 %v248
    %283 = vmatprep.subr.mxu0 0.0
    %284 = vmatpush1.msra.mxu0 %v249
    %285 = vmatprep.subr.mxu0 0.0
    %286 = vmatpush1.msra.mxu0 %v250
    %287 = vmatprep.subr.mxu0 0.0
    %288 = vmatpush1.msra.mxu0 %v251
    %289 = vmatprep.subr.mxu0 0.0
    %290 = vmatpush1.msra.mxu0 %v252
    %291 = vmatprep.subr.mxu0 0.0
    %292 = vmatpush1.msra.mxu0 %v253
    %293 = vmatprep.subr.mxu0 0.0
    %294 = vmatpush1.msra.mxu0 0.0
    %295 = vmatprep.subr.mxu0 0.0
    %296 = vmatpush1.msra.mxu0 0.0
    %297 = vmatprep.subr.mxu0 0.0
    %298 = vmatpush1.msra.mxu0 0.0
    %299 = vmatprep.subr.mxu0 0.0
    %300 = vmatpush1.msra.mxu0 0.0
    %301 = vmatprep.subr.mxu0 0.0
    %302 = vmatpush1.msra.mxu0 0.0
    %303 = vmatprep.subr.mxu0 0.0
    %304 = vmatpush1.msra.mxu0 0.0
    %305 = vmatprep.subr.mxu0 0.0
    %306 = vmatpush1.msra.mxu0 0.0
    %307 = vmatprep.subr.mxu0 0.0
    %308 = vmatpush1.msra.mxu0 0.0
    %309 = vmatprep.subr.mxu0 0.0
    %310 = vmatpush1.msra.mxu0 0.0
    %311 = vmatprep.subr.mxu0 0.0
    %312 = vmatpush1.msra.mxu0 0.0
    %313 = vmatprep.subr.mxu0 0.0
    %314 = vmatpush1.msra.mxu0 0.0
    %315 = vmatprep.subr.mxu0 0.0
    %316 = vmatpush1.msra.mxu0 0.0
    %317 = vmatprep.subr.mxu0 0.0
    %318 = vmatpush1.msra.mxu0 0.0
    %319 = vmatprep.subr.mxu0 0.0
    %320 = vmatpush1.msra.mxu0 0.0
    %321 = vmatprep.subr.mxu0 0.0
    %322 = vmatpush1.msra.mxu0 0.0
    %323 = vmatprep.subr.mxu0 0.0
    %324 = vmatpush1.msra.mxu0 0.0
    %325 = vmatprep.mubr.f32.mxu0 0.0
    %326 = vmatmul.mubr.f32.gmra.mrb[0].mxu0 %v143
    %v327 = vpop.f32.mrb[0].mxu0
    %v328 = vadd.f32 %v259, %v327
    %v329 = vpop.f32.mrb[0].mxu0
    %330 = vdwg.mxu0
    %v331 = vmax.f32 %v328, 0.0
    %v332 = vld [vmem:[%s7] sm:$0xff]
    %v333 = vld [vmem:[%s7 + $0x8] sm:$0xff]
    %v334 = vld [vmem:[%s7 + $0x10] sm:$0xff]
    %v335 = vld [vmem:[%s7 + $0x18] sm:$0xff]
    %v336 = vld [vmem:[%s7 + $0x20] sm:$0xff]
    %v337 = vld [vmem:[%s7 + $0x28] sm:$0xff]
    %v338 = vld [vmem:[%s7 + $0x30] sm:$0xff]
    %v339 = vld [vmem:[%s7 + $0x38] sm:$0xff]
    %v340 = vld [vmem:[%s7 + $0x40] sm:$0xff]
    %v341 = vld [vmem:[%s7 + $0x48] sm:$0xff]
    %v342 = vld [vmem:[%s7 + $0x50] sm:$0xff]
    %v343 = vld [vmem:[%s7 + $0x58] sm:$0xff]
    %v344 = vld [vmem:[%s7 + $0x60] sm:$0xff]
    %v345 = vld [vmem:[%s7 + $0x68] sm:$0xff]
    %v346 = vld [vmem:[%s7 + $0x70] sm:$0xff]
    %v347 = vld [vmem:[%s7 + $0x78] sm:$0xff]
    %v348 = vld [vmem:[%s8] sm:$0xff]
    %v349 = vld [vmem:[%s8 + $0x8] sm:$0xff]
    %v350 = vld [vmem:[%s8 + $0x10] sm:$0xff]
    %v351 = vld [vmem:[%s8 + $0x18] sm:$0xff]
    %v352 = vld [vmem:[%s8 + $0x20] sm:$0xff]
    %v353 = vld [vmem:[%s8 + $0x28] sm:$0xff]
    %v354 = vld [vmem:[%s8 + $0x30] sm:$0xff]
    %v355 = vld [vmem:[%s8 + $0x38] sm:$0xff]
    %v356 = vld [vmem:[%s8 + $0x40] sm:$0xff]
    %v357 = vld [vmem:[%s8 + $0x48] sm:$0xff]
    %v358 = vld [vmem:[%s8 + $0x50] sm:$0xff]
    %v359 = vld [vmem:[%s8 + $0x58] sm:$0xff]
    %v360 = vld [vmem:[%s8 + $0x60] sm:$0xff]
    %v361 = vld [vmem:[%s8 + $0x68] sm:$0xff]
    %v362 = vld [vmem:[%s8 + $0x70] sm:$0xff]
    %v363 = vld [vmem:[%s8 + $0x78] sm:$0xff]
    %364 = vmatprep.subr.mxu0 0.0
    %365 = vmatpush1.msra.mxu0 %v348
    %366 = vmatprep.subr.mxu0 0.0
    %367 = vmatpush1.msra.mxu0 %v349
    %368 = vmatprep.subr.mxu0 0.0
    %369 = vmatpush1.msra.mxu0 %v350
    %370 = vmatprep.subr.mxu0 0.0
    %371 = vmatpush1.msra.mxu0 %v351
    %372 = vmatprep.subr.mxu0 0.0
    %373 = vmatpush1.msra.mxu0 %v352
    %374 = vmatprep.subr.mxu0 0.0
    %375 = vmatpush1.msra.mxu0 %v353
    %376 = vmatprep.subr.mxu0 0.0
    %377 = vmatpush1.msra.mxu0 %v354
    %378 = vmatprep.subr.mxu0 0.0
    %379 = vmatpush1.msra.mxu0 %v355
    %380 = vmatprep.subr.mxu0 0.0
    %381 = vmatpush1.msra.mxu0 %v356
    %382 = vmatprep.subr.mxu0 0.0
    %383 = vmatpush1.msra.mxu0 %v357
    %384 = vmatprep.subr.mxu0 0.0
    %385 = vmatpush1.msra.mxu0 %v358
    %386 = vmatprep.subr.mxu0 0.0
    %387 = vmatpush1.msra.mxu0 %v359
    %388 = vmatprep.subr.mxu0 0.0
    %389 = vmatpush1.msra.mxu0 %v360
    %390 = vmatprep.subr.mxu0 0.0
    %391 = vmatpush1.msra.mxu0 %v361
    %392 = vmatprep.subr.mxu0 0.0
    %393 = vmatpush1.msra.mxu0 %v362
    %394 = vmatprep.subr.mxu0 0.0
    %395 = vmatpush1.msra.mxu0 %v363
    %396 = vmatprep.subr.mxu0 0.0
    %397 = vmatpush1.msra.mxu0 0.0
    %398 = vmatprep.subr.mxu0 0.0
    %399 = vmatpush1.msra.mxu0 0.0
    %400 = vmatprep.subr.mxu0 0.0
    %401 = vmatpush1.msra.mxu0 0.0
    %402 = vmatprep.subr.mxu0 0.0
    %403 = vmatpush1.msra.mxu0 0.0
    %404 = vmatprep.subr.mxu0 0.0
    %405 = vmatpush1.msra.mxu0 0.0
    %406 = vmatprep.subr.mxu0 0.0
    %407 = vmatpush1.msra.mxu0 0.0
    %408 = vmatprep.subr.mxu0 0.0
    %409 = vmatpush1.msra.mxu0 0.0
    %410 = vmatprep.subr.mxu0 0.0
    %411 = vmatpush1.msra.mxu0 0.0
    %412 = vmatprep.subr.mxu0 0.0
    %413 = vmatpush1.msra.mxu0 0.0
    %414 = vmatprep.subr.mxu0 0.0
    %415 = vmatpush1.msra.mxu0 0.0
    %416 = vmatprep.subr.mxu0 0.0
    %417 = vmatpush1.msra.mxu0 0.0
    %418 = vmatprep.subr.mxu0 0.0
    %419 = vmatpush1.msra.mxu0 0.0
    %420 = vmatprep.subr.mxu0 0.0
    %421 = vmatpush1.msra.mxu0 0.0
    %422 = vmatprep.subr.mxu0 0.0
    %423 = vmatpush1.msra.mxu0 0.0
    %424 = vmatprep.subr.mxu0 0.0
    %425 = vmatpush1.msra.mxu0 0.0
    %426 = vmatprep.subr.mxu0 0.0
    %427 = vmatpush1.msra.mxu0 0.0
    %428 = vmatprep.mubr.f32.mxu0 0.0
    %429 = vmatmul.mubr.f32.gmra.mrb[0].mxu0 %v331
    %v430 = vpop.f32.mrb[0].mxu0
    %v431 = vadd.f32 0.0, %v430
    %v432 = vpop.f32.mrb[0].mxu0
    %433 = vdwg.mxu0
    %434 = vmatprep.subr.mxu0 0.0
    %435 = vmatpush1.msra.mxu0 %v332
    %436 = vmatprep.subr.mxu0 0.0
    %437 = vmatpush1.msra.mxu0 %v333
    %438 = vmatprep.subr.mxu0 0.0
    %439 = vmatpush1.msra.mxu0 %v334
    %440 = vmatprep.subr.mxu0 0.0
    %441 = vmatpush1.msra.mxu0 %v335
    %442 = vmatprep.subr.mxu0 0.0
    %443 = vmatpush1.msra.mxu0 %v336
    %444 = vmatprep.subr.mxu0 0.0
    %445 = vmatpush1.msra.mxu0 %v337
    %446 = vmatprep.subr.mxu0 0.0
    %447 = vmatpush1.msra.mxu0 %v338
    %448 = vmatprep.subr.mxu0 0.0
    %449 = vmatpush1.msra.mxu0 %v339
    %450 = vmatprep.subr.mxu0 0.0
    %451 = vmatpush1.msra.mxu0 %v340
    %452 = vmatprep.subr.mxu0 0.0
    %453 = vmatpush1.msra.mxu0 %v341
    %454 = vmatprep.subr.mxu0 0.0
    %455 = vmatpush1.msra.mxu0 %v342
    %456 = vmatprep.subr.mxu0 0.0
    %457 = vmatpush1.msra.mxu0 %v343
    %458 = vmatprep.subr.mxu0 0.0
    %459 = vmatpush1.msra.mxu0 %v344
    %460 = vmatprep.subr.mxu0 0.0
    %461 = vmatpush1.msra.mxu0 %v345
    %462 = vmatprep.subr.mxu0 0.0
    %463 = vmatpush1.msra.mxu0 %v346
    %464 = vmatprep.subr.mxu0 0.0
    %465 = vmatpush1.msra.mxu0 %v347
    %466 = vmatprep.subr.mxu0 0.0
    %467 = vmatpush1.msra.mxu0 0.0
    %468 = vmatprep.subr.mxu0 0.0
    %469 = vmatpush1.msra.mxu0 0.0
    %470 = vmatprep.subr.mxu0 0.0
    %471 = vmatpush1.msra.mxu0 0.0
    %472 = vmatprep.subr.mxu0 0.0
    %473 = vmatpush1.msra.mxu0 0.0
    %474 = vmatprep.subr.mxu0 0.0
    %475 = vmatpush1.msra.mxu0 0.0
    %476 = vmatprep.subr.mxu0 0.0
    %477 = vmatpush1.msra.mxu0 0.0
    %478 = vmatprep.subr.mxu0 0.0
    %479 = vmatpush1.msra.mxu0 0.0
    %480 = vmatprep.subr.mxu0 0.0
    %481 = vmatpush1.msra.mxu0 0.0
    %482 = vmatprep.subr.mxu0 0.0
    %483 = vmatpush1.msra.mxu0 0.0
    %484 = vmatprep.subr.mxu0 0.0
    %485 = vmatpush1.msra.mxu0 0.0
    %486 = vmatprep.subr.mxu0 0.0
    %487 = vmatpush1.msra.mxu0 0.0
    %488 = vmatprep.subr.mxu0 0.0
    %489 = vmatpush1.msra.mxu0 0.0
    %490 = vmatprep.subr.mxu0 0.0
    %491 = vmatpush1.msra.mxu0 0.0
    %492 = vmatprep.subr.mxu0 0.0
    %493 = vmatpush1.msra.mxu0 0.0
    %494 = vmatprep.subr.mxu0 0.0
    %495 = vmatpush1.msra.mxu0 0.0
    %496 = vmatprep.subr.mxu0 0.0
    %497 = vmatpush1.msra.mxu0 0.0
    %498 = vmatprep.mubr.f32.mxu0 0.0
    %499 = vmatmul.mubr.f32.gmra.mrb[0].mxu0 %v237
    %v500 = vpop.f32.mrb[0].mxu0
    %v501 = vadd.f32 %v431, %v500
    %v502 = vpop.f32.mrb[0].mxu0
    %503 = vdwg.mxu0
    %v504 = vld [vmem:[%s9] sm:$0x1]
    %v506 = vlaneseq
    %v507 = vshrl.u32 %v506, 7
    %v508 = vsub.s32 0, %v507
    %v509 = vrot.slane %v504, %v508
    %v511 = vadd.f32 %v501, %v509
    %vm512 = vcmask 64512
    %513 = vst.msk [vmem:[#allocation5] sm:$0xff] %vm512, %v511
    // Predicated region
    $region46: #{tpu_custom_call.1} parent=1 // pred_check
      _
    $region47: #{tpu_custom_call.1} parent=1 // pred_check_branch
      %515 = sbr.rel (0) target = $region49
    $region48: #{tpu_custom_call.1} parent=1 // pred_region
      %s517 = ssub.s32 128, 128
      %518 = vsyncadd [#allocation4], %s517
      %s520 = sshll.u32 [#allocation5], 4
      %s521 = int_to_ptr.vmem [resolvable:$true] %s520
      %523 = dma.vmem_to_hbm [thread:$0]  %s521, 128, %s10, [#allocation4]
    $region49: #{tpu_custom_call.1} parent=1 // pred_fallthru
      _
    // Predicated region
    $region50: #{tpu_custom_call.1} parent=1 // pred_check
      _
    $region51: #{tpu_custom_call.1} parent=1 // pred_check_branch
      %525 = sbr.rel (0) target = $region53
    $region52: #{tpu_custom_call.1} parent=1 // pred_region
      %526 = dma.done [#allocation4], 128
    $region53: #{tpu_custom_call.1} parent=1 // pred_fallthru
      _
    %527 = vsyncpa [#allocation3], 1
    %528 = vsyncpa [#allocation4], 1

</llo_original>
